<compile_context>
chip_gen: v7x
topology: tpu7x:2x2x1
jax: 0.10.0
libtpu: 0.0.40
codegen_flags: <defaults>
</compile_context>

<pallas_src>
import functools

import jax
import jax.numpy as jnp
import numpy as np
from jax import lax
from jax.experimental import pallas as pl
from jax.experimental.pallas import tpu as pltpu

ALPHA = 0.1
BETA = 0.02
GAMMA = 1  # factor = |1 - st| ** 1 in the reference module


def _round_up(x, m):
    return (x + m - 1) // m * m


def _focal_loss_kernel(pred_ref, gt_ref, tw_ref, out_ref, *,
                       use_target_weight, inv_bp):
    """One grid step: reduce a (rows_tile, P) slab to an (8, P) partial sum.

    pred_ref/gt_ref: (rows_tile, P) blocks; tw_ref: (rows_tile, 1);
    out_ref: (8, P) f32 partial-sum output (already scaled by 1/(B*P)).
    """
    rows, p = pred_ref.shape
    n_groups = rows // 8  # rows_tile is always a multiple of 8

    def body(g, acc):
        r0 = pl.multiple_of(g * 8, 8)
        pred = pred_ref[pl.ds(r0, 8), :].astype(jnp.float32)   # (8, P)
        gt = gt_ref[pl.ds(r0, 8), :].astype(jnp.float32)       # (8, P)
        # st = where(gt >= 0.01, pred - a, 1 - pred - b); factor = |1 - st|
        # simplified:  |1 + a - pred|  /  |pred + b|
        factor = jnp.where(gt >= 0.01,
                           jnp.abs((1.0 + ALPHA) - pred),
                           jnp.abs(pred + BETA))
        term = (pred - gt) ** 2 * factor
        if use_target_weight:
            term = term * tw_ref[pl.ds(r0, 8), :].astype(jnp.float32)
        return acc + term

    partial = lax.fori_loop(0, n_groups, body, jnp.zeros((8, p), jnp.float32))
    out_ref[...] = partial * inv_bp


def joints_focal_loss(output, target, target_weight, *, use_target_weight):
    """output/target: (B, J, H, W); target_weight: (B, J, 1). Returns scalar f32."""
    B, J, H, W = output.shape
    P = H * W
    N = B * J

    # Free reshapes — no transpose, no extra HBM pass, native dtype kept.
    pred = output.reshape(N, P)
    gt = target.reshape(N, P)
    tw = target_weight.reshape(N, 1)

    # Tile sizing: big row tiles for DMA efficiency, capped at ~4 MiB/input
    # block so 2 inputs x 2 pipeline buffers fit every generation's scoped VMEM.
    itemsize = jnp.dtype(output.dtype).itemsize
    max_rows_vmem = max(8, ((4 * 1024 * 1024) // max(P * itemsize, 1)) // 8 * 8)
    rows_cap = max(8, min(512, max_rows_vmem))
    num_tiles = -(-N // rows_cap)
    rows_tile = _round_up(-(-N // num_tiles), 8)
    n_pad = num_tiles * rows_tile

    if n_pad > N:
        # Zero rows contribute exactly 0 to the loss ((pred - gt)^2 == 0).
        pad = ((0, n_pad - N), (0, 0))
        pred = jnp.pad(pred, pad)
        gt = jnp.pad(gt, pad)
        tw = jnp.pad(tw, pad)

    kernel = functools.partial(
        _focal_loss_kernel,
        use_target_weight=use_target_weight,
        inv_bp=1.0 / float(B * P),
    )

    partials = pl.pallas_call(
        kernel,
        out_shape=jax.ShapeDtypeStruct((num_tiles, 8, P), jnp.float32),
        grid=(num_tiles,),
        in_specs=[
            pl.BlockSpec((rows_tile, P), lambda i: (i, 0)),   # pred rows
            pl.BlockSpec((rows_tile, P), lambda i: (i, 0)),   # gt rows
            pl.BlockSpec((rows_tile, 1), lambda i: (i, 0)),   # per-row weight
        ],
        out_specs=pl.BlockSpec((None, 8, P), lambda i: (i, 0, 0)),
        compiler_params=pltpu.CompilerParams(
            dimension_semantics=("parallel",),            # megacore-friendly
            vmem_limit_bytes=32 * 1024 * 1024,
        ),
    )(pred, gt, tw)

    # Tiny finalize in plain JAX: sum of per-tile partials (already /(B*P)),
    # then the per-joint average and the 0.5 factor of the unweighted branch.
    scale = (1.0 if use_target_weight else 0.5) / float(J)
    return jnp.sum(partials, dtype=jnp.float32) * scale


def joints_focal_loss_ref(output, target, target_weight, *, use_target_weight):
    """Pure-JAX transcription of the PyTorch forward (for validation)."""
    B, J = output.shape[0], output.shape[1]
    pred = output.reshape(B, J, -1).astype(jnp.float32)
    gt = target.reshape(B, J, -1).astype(jnp.float32)
    loss = 0.0
    for idx in range(J):
        hp, hg = pred[:, idx], gt[:, idx]
        st = jnp.where(hg >= 0.01, hp - ALPHA, 1.0 - hp - BETA)
        factor = jnp.abs(1.0 - st) ** GAMMA
        if use_target_weight:
            out = (hp - hg) ** 2 * factor * target_weight[:, idx]
            loss += out.mean()
        else:
            loss += 0.5 * ((hp - hg) ** 2 * factor).mean()
    return loss / J


if __name__ == "__main__":
    B, J, H, W = 2, 4, 16, 16
    key = jax.random.PRNGKey(0)
    k1, k2, k3 = jax.random.split(key, 3)

    output = jax.random.uniform(k1, (B, J, H, W), dtype=jnp.float32)          # predicted heatmaps
    target = jax.random.uniform(k2, (B, J, H, W), dtype=jnp.float32)          # gt heatmaps
    target_weight = jax.random.uniform(k3, (B, J, 1), dtype=jnp.float32)      # per-joint weights

    ok = True
    for use_tw in (True, False):
        got = jax.block_until_ready(
            joints_focal_loss(output, target, target_weight, use_target_weight=use_tw)
        )
        want = jax.block_until_ready(
            joints_focal_loss_ref(output, target, target_weight, use_target_weight=use_tw)
        )
        if not np.allclose(np.asarray(got), np.asarray(want), rtol=1e-4, atol=1e-6):
            ok = False
            print(f"MISMATCH use_target_weight={use_tw}: kernel={got} ref={want}")

    if ok:
        print("KERNEL_OK")
</pallas_src>

<mosaic_0001>
module attributes {stable_mosaic.version = 11 : i64} {
  func.func @_focal_loss_kernel(%arg0: i32, %arg1: memref<8x256xf32, #tpu.memory_space<vmem>>, %arg2: memref<8x256xf32, #tpu.memory_space<vmem>>, %arg3: memref<8x1xf32, #tpu.memory_space<vmem>>, %arg4: memref<1x8x256xf32, #tpu.memory_space<vmem>>) attributes {dimension_semantics = [#tpu.dimension_semantics<parallel>], iteration_bounds = array<i64: 1>, scalar_prefetch = 0 : i64, scratch_operands = 0 : i64, tpu.core_type = #tpu.core_type<tc>, window_params = [{transform_indices = @transform_0, window_bounds = array<i64: 8, 256>}, {transform_indices = @transform_1, window_bounds = array<i64: 8, 256>}, {transform_indices = @transform_2, window_bounds = array<i64: 8, 1>}, {transform_indices = @transform_3, window_bounds = array<i64: 1, 8, 256>}]} {
    %cst = arith.constant 0.000000e+00 : f32
    %0 = vector.broadcast %cst : f32 to vector<8x256xf32>
    %c0_i32 = arith.constant 0 : i32
    %c8_i32 = arith.constant 8 : i32
    %1 = arith.muli %c0_i32, %c8_i32 : i32
    %2 = tpu.assume_multiple %1, 8 : i32
    %3 = arith.index_cast %2 : i32 to index
    %c0 = arith.constant 0 : index
    %4 = vector.load %arg1[%3, %c0] : memref<8x256xf32, #tpu.memory_space<vmem>>, vector<8x256xf32>
    %5 = arith.index_cast %2 : i32 to index
    %c0_0 = arith.constant 0 : index
    %6 = vector.load %arg2[%5, %c0_0] : memref<8x256xf32, #tpu.memory_space<vmem>>, vector<8x256xf32>
    %cst_1 = arith.constant 0.00999999977 : f32
    %7 = vector.broadcast %cst_1 : f32 to vector<8x256xf32>
    %8 = arith.cmpf oge, %6, %7 : vector<8x256xf32>
    %cst_2 = arith.constant 1.100000e+00 : f32
    %9 = vector.broadcast %cst_2 : f32 to vector<8x256xf32>
    %10 = arith.subf %9, %4 : vector<8x256xf32>
    %11 = math.absf %10 : vector<8x256xf32>
    %cst_3 = arith.constant 2.000000e-02 : f32
    %12 = vector.broadcast %cst_3 : f32 to vector<8x256xf32>
    %13 = arith.addf %4, %12 : vector<8x256xf32>
    %14 = math.absf %13 : vector<8x256xf32>
    %15 = arith.select %8, %11, %14 : vector<8x256xi1>, vector<8x256xf32>
    %16 = arith.subf %4, %6 : vector<8x256xf32>
    %17 = arith.mulf %16, %16 : vector<8x256xf32>
    %18 = arith.mulf %17, %15 : vector<8x256xf32>
    %19 = arith.index_cast %2 : i32 to index
    %c0_4 = arith.constant 0 : index
    %20 = vector.load %arg3[%19, %c0_4] : memref<8x1xf32, #tpu.memory_space<vmem>>, vector<8x1xf32>
    %21 = vector.broadcast %20 : vector<8x1xf32> to vector<8x256xf32>
    %22 = arith.mulf %18, %21 : vector<8x256xf32>
    %23 = arith.addf %0, %22 : vector<8x256xf32>
    %c1_i32 = arith.constant 1 : i32
    %cst_5 = arith.constant 0.001953125 : f32
    %24 = vector.broadcast %cst_5 : f32 to vector<8x256xf32>
    %25 = arith.mulf %23, %24 : vector<8x256xf32>
    %c0_6 = arith.constant 0 : index
    %c0_7 = arith.constant 0 : index
    %c0_8 = arith.constant 0 : index
    %26 = vector.load %arg4[%c0_6, %c0_7, %c0_8] : memref<1x8x256xf32, #tpu.memory_space<vmem>>, vector<1x8x256xf32>
    %27 = vector.shape_cast %26 : vector<1x8x256xf32> to vector<8x256xf32>
    %28 = vector.shape_cast %25 : vector<8x256xf32> to vector<1x8x256xf32>
    tpu.vector_store %arg4[%c0_6, %c0_7, %c0_8], %28 {strides = array<i32>} : memref<1x8x256xf32, #tpu.memory_space<vmem>>, vector<1x8x256xf32>,
    return
  }
  func.func @transform_0(%arg0: i32) -> (i32, i32) {
    %c0_i32 = arith.constant 0 : i32
    %c0_i32_0 = arith.constant 0 : i32
    return %arg0, %c0_i32 : i32, i32
  }
  func.func @transform_1(%arg0: i32) -> (i32, i32) {
    %c0_i32 = arith.constant 0 : i32
    %c0_i32_0 = arith.constant 0 : i32
    return %arg0, %c0_i32 : i32, i32
  }
  func.func @transform_2(%arg0: i32) -> (i32, i32) {
    %c0_i32 = arith.constant 0 : i32
    %c0_i32_0 = arith.constant 0 : i32
    return %arg0, %c0_i32 : i32, i32
  }
  func.func @transform_3(%arg0: i32) -> (i32, i32, i32) {
    %c0_i32 = arith.constant 0 : i32
    %c0_i32_0 = arith.constant 0 : i32
    %c0_i32_1 = arith.constant 0 : i32
    return %arg0, %c0_i32, %c0_i32_0 : i32, i32, i32
  }
}

</mosaic_0001>

<llo_original>
// kernel: tpu_custom_call.1
$region0: #{tpu_custom_call.1}
  #allocation0 [shape = 'u32[]', space=smem, size = 0x4, offset = 0x4, fixed_abs, tag = 'smem constant byte address 0x4 - core index']
  #allocation1 [shape = 'u32[144,128]{1,0:T(1,128)}', space=vmem, size = 0x12000, scoped, tag = 'internal scratch']
  %s0 = inlined_call_operand.hbm [shape: f32[8,256], index: 0, kind: input, shape index: {}]
  %s1 = inlined_call_operand.hbm [shape: f32[8,256], index: 1, kind: input, shape index: {}]
  %s2 = inlined_call_operand.vmem [shape: f32[8,1], index: 2, kind: input, shape index: {}]
  %s3 = inlined_call_operand.hbm [shape: f32[1,8,256], index: 3, kind: output, shape index: {}]
  %s4 = sld [smem:[#allocation0]]
  $region30: #{tpu_custom_call.1} parent=0
    _
  %s6 = ssub.s32 1, %s4
  %s7 = scalar_select 0, %s6, %s4
  $region1: #{tpu_custom_call.1} parent=0
    #allocation2 [shape = 'u8[8192]{0}', space=vmem, size = 0x2000, scoped, tag = 'input window, operand 0, single buffered']
    #allocation3 [shape = 's32[1]{0}', space=sflag, size = 0x4, scoped, tag = 'scoped memory for tpu_custom_call.1']
    #allocation4 [shape = 's32[1]{0}', space=sflag, size = 0x4, scoped, tag = 'scoped memory for tpu_custom_call.1']
    #allocation5 [shape = 'u8[8192]{0}', space=vmem, size = 0x2000, scoped, tag = 'input window, operand 1, single buffered']
    #allocation6 [shape = 's32[1]{0}', space=sflag, size = 0x4, scoped, tag = 'scoped memory for tpu_custom_call.1']
    #allocation7 [shape = 'u8[8192]{0}', space=vmem, size = 0x2000, scoped, tag = 'output window, operand 0, single buffered']
    %8 = vsyncpa [#allocation3], 0
    %9 = vsyncpa [#allocation6], 0
    %10 = vsyncpa [#allocation4], 0
    // Predicated region
    $region2: #{tpu_custom_call.1} parent=1 // pred_check
      _
    $region3: #{tpu_custom_call.1} parent=1 // pred_check_branch
      %12 = sbr.rel (0) target = $region5
    $region4: #{tpu_custom_call.1} parent=1 // pred_region
      %s14 = ssub.s32 256, 256
      %15 = vsyncadd [#allocation3], %s14
      %s17 = sshll.u32 [#allocation2], 4
      %s18 = int_to_ptr.vmem [resolvable:$true] %s17
      %20 = dma.hbm_to_vmem [thread:$0]  %s0, 256, %s18, [#allocation3]
    $region5: #{tpu_custom_call.1} parent=1 // pred_fallthru
      _
    // Predicated region
    $region6: #{tpu_custom_call.1} parent=1 // pred_check
      _
    $region7: #{tpu_custom_call.1} parent=1 // pred_check_branch
      %22 = sbr.rel (0) target = $region9
    $region8: #{tpu_custom_call.1} parent=1 // pred_region
      %s24 = ssub.s32 256, 256
      %25 = vsyncadd [#allocation6], %s24
      %s27 = sshll.u32 [#allocation5], 4
      %s28 = int_to_ptr.vmem [resolvable:$true] %s27
      %30 = dma.hbm_to_vmem [thread:$0]  %s1, 256, %s28, [#allocation6]
    $region9: #{tpu_custom_call.1} parent=1 // pred_fallthru
      _
    // Predicated region
    $region10: #{tpu_custom_call.1} parent=1 // pred_check
      _
    $region11: #{tpu_custom_call.1} parent=1 // pred_check_branch
      %32 = sbr.rel (0) target = $region13
    $region12: #{tpu_custom_call.1} parent=1 // pred_region
      _
    $region13: #{tpu_custom_call.1} parent=1 // pred_fallthru
      _
    // Predicated region
    $region14: #{tpu_custom_call.1} parent=1 // pred_check
      _
    $region15: #{tpu_custom_call.1} parent=1 // pred_check_branch
      %34 = sbr.rel (0) target = $region17
    $region16: #{tpu_custom_call.1} parent=1 // pred_region
      %35 = dma.done [#allocation3], 256
    $region17: #{tpu_custom_call.1} parent=1 // pred_fallthru
      _
    // Predicated region
    $region18: #{tpu_custom_call.1} parent=1 // pred_check
      _
    $region19: #{tpu_custom_call.1} parent=1 // pred_check_branch
      %37 = sbr.rel (0) target = $region21
    $region20: #{tpu_custom_call.1} parent=1 // pred_region
      %38 = dma.done [#allocation6], 256
    $region21: #{tpu_custom_call.1} parent=1 // pred_fallthru
      _
    %s39 = smul.u32 0, 2
    %s40 = smul.addr %s39, 8
    %s41 = scalar_lea.vmem [#allocation2], %s40
    %v42 = vld [vmem:[%s41] sm:$0xff]
    %v43 = vld [vmem:[%s41 + $0x8] sm:$0xff]
    %s44 = smul.addr %s39, 8
    %s45 = scalar_lea.vmem [#allocation5], %s44
    %v46 = vld [vmem:[%s45] sm:$0xff]
    %v47 = vld [vmem:[%s45 + $0x8] sm:$0xff]
    %vm48 = vcmp.ge.f32.partialorder %v46, 0.01
    %vm49 = vcmp.ge.f32.partialorder %v47, 0.01
    %v50 = vsub.f32 1.1, %v42
    %v51 = vsub.f32 1.1, %v43
    %v52 = vand.u32 2147483647, %v50
    %v53 = vand.u32 2147483647, %v51
    %v54 = vadd.f32 %v42, 0.02
    %v55 = vadd.f32 %v43, 0.02
    %v56 = vand.u32 2147483647, %v54
    %v57 = vand.u32 2147483647, %v55
    %v58 = vsel %vm48, %v52, %v56
    %v59 = vsel %vm49, %v53, %v57
    %v60 = vsub.f32 %v42, %v46
    %v61 = vsub.f32 %v43, %v47
    %v62 = vmul.f32 %v60, %v60
    %v63 = vmul.f32 %v61, %v61
    %v64 = vmul.f32 %v62, %v58
    %v65 = vmul.f32 %v63, %v59
    %v66 = vld [vmem:[%s2] sm:$0xff]
    %68 = vset.pattern.permute.xlu0 0
    %69 = vperm.xlu0 %68, %v66
    %v70 = vpop.permute.xlu0 %69
    %v72 = vmul.f32 %v64, %v70
    %v73 = vmul.f32 %v65, %v70
    %v74 = vadd.f32 %v72, 0.0
    %v75 = vadd.f32 %v73, 0.0
    %v76 = vmul.f32 %v74, 0.001953125
    %v77 = vmul.f32 %v75, 0.001953125
    %78 = vst [vmem:[#allocation7] sm:$0xff] %v76
    %79 = vst [vmem:[#allocation7 + $0x8] sm:$0xff] %v77
    // Predicated region
    $region22: #{tpu_custom_call.1} parent=1 // pred_check
      _
    $region23: #{tpu_custom_call.1} parent=1 // pred_check_branch
      %81 = sbr.rel (0) target = $region25
    $region24: #{tpu_custom_call.1} parent=1 // pred_region
      %s83 = ssub.s32 256, 256
      %84 = vsyncadd [#allocation4], %s83
      %s86 = sshll.u32 [#allocation7], 4
      %s87 = int_to_ptr.vmem [resolvable:$true] %s86
      %89 = dma.vmem_to_hbm [thread:$0]  %s87, 256, %s3, [#allocation4]
    $region25: #{tpu_custom_call.1} parent=1 // pred_fallthru
      _
    // Predicated region
    $region26: #{tpu_custom_call.1} parent=1 // pred_check
      _
    $region27: #{tpu_custom_call.1} parent=1 // pred_check_branch
      %91 = sbr.rel (0) target = $region29
    $region28: #{tpu_custom_call.1} parent=1 // pred_region
      %92 = dma.done [#allocation4], 256
    $region29: #{tpu_custom_call.1} parent=1 // pred_fallthru
      _
    %93 = vsyncpa [#allocation3], 1
    %94 = vsyncpa [#allocation6], 1
    %95 = vsyncpa [#allocation4], 1

</llo_original>
